<compile_context>
chip_gen: v5e
topology: v5e:2x2
jax: 0.10.0
libtpu: 0.0.40
codegen_flags: <defaults>
</compile_context>

<pallas_src>
import functools

import jax
import jax.numpy as jnp
from jax import lax
from jax.experimental import pallas as pl
from jax.experimental.pallas import tpu as pltpu

NUM_FEATURES = 8          # California-housing feature count (X.shape[1])
H1, H2, OUT = 64, 32, 1
DROPOUT_RATE = 0.1
LANE = 128


def _round_up(x, m):
    return (x + m - 1) // m * m


def _hash_keep_mask(shape, seed_u32, col0_u32, salt, thresh_u32):
    """Fallback keep-mask from a counter-based integer hash (non-TPU backends)."""
    rows = lax.broadcasted_iota(jnp.uint32, shape, 0)
    cols = lax.broadcasted_iota(jnp.uint32, shape, 1) + col0_u32
    h = (cols * jnp.uint32(0x9E3779B1)) ^ (rows * jnp.uint32(0x85EBCA77))
    h = h + seed_u32 * jnp.uint32(0x27D4EB2F) + jnp.uint32(salt)
    # murmur3 fmix32 finalizer
    h = h ^ (h >> 16)
    h = h * jnp.uint32(0x85EBCA6B)
    h = h ^ (h >> 13)
    h = h * jnp.uint32(0xC2B2AE35)
    h = h ^ (h >> 16)
    return h >= thresh_u32      # keep with probability (1 - p)


def _hw_keep_mask(shape, thresh_u32):
    """Keep-mask from the TPU hardware PRNG (must call pltpu.prng_seed first)."""
    bits = pltpu.prng_random_bits(shape)
    if bits.dtype != jnp.uint32:
        bits = pltpu.bitcast(bits, jnp.uint32)
    return bits >= thresh_u32


def housing_nn_kernel(seed_ref, xt_ref, w1_ref, b1_ref, w2_ref, b2_ref,
                      w3_ref, b3_ref, ot_ref, *, dropout_rate, training,
                      use_hw_prng, block_batch):
    xt = xt_ref[...]                                            # (F, TB) bf16

    apply_dropout = training and dropout_rate > 0.0
    if apply_dropout:
        thresh = jnp.uint32(min(int(dropout_rate * 4294967296.0), 4294967295))
        # Grid is (batch_block, mc_sample): axis 0 = block, axis 1 = sample.
        if use_hw_prng:
            pltpu.prng_seed(seed_ref[0], pl.program_id(1), pl.program_id(0))
        else:
            seed_u32 = (seed_ref[0].astype(jnp.uint32)
                        + lax.convert_element_type(pl.program_id(1), jnp.uint32)
                        * jnp.uint32(0x01000193))
            col0_u32 = lax.convert_element_type(
                pl.program_id(0) * block_batch, jnp.uint32)

    # fc1 + relu : (H1, F) @ (F, TB) -> (H1, TB), f32 accumulation.
    h1 = jnp.dot(w1_ref[...], xt, preferred_element_type=jnp.float32)
    h1 = jnp.maximum(h1 + b1_ref[...], 0.0)

    if apply_dropout:
        # keep_scale is pre-folded into w2/w3 in the wrapper -> mask only.
        if use_hw_prng:
            keep1 = _hw_keep_mask(h1.shape, thresh)
        else:
            keep1 = _hash_keep_mask(h1.shape, seed_u32, col0_u32,
                                    0x3C6EF372, thresh)
        h1 = jnp.where(keep1, h1, 0.0)

    # fc2 + relu : (H2, H1) @ (H1, TB) -> (H2, TB).
    h2 = jnp.dot(w2_ref[...], h1.astype(w2_ref.dtype),
                 preferred_element_type=jnp.float32)
    h2 = jnp.maximum(h2 + b2_ref[...], 0.0)

    if apply_dropout:
        if use_hw_prng:
            keep2 = _hw_keep_mask(h2.shape, thresh)
        else:
            keep2 = _hash_keep_mask(h2.shape, seed_u32, col0_u32,
                                    0x77CB3B42, thresh)
        h2 = jnp.where(keep2, h2, 0.0)

    # fc3 : (OUT, H2) @ (H2, TB) -> (OUT, TB); lane-dense store.
    out = jnp.dot(w3_ref[...], h2.astype(w3_ref.dtype),
                  preferred_element_type=jnp.float32) + b3_ref[...]
    ot_ref[...] = out.reshape(ot_ref.shape).astype(ot_ref.dtype)


def housing_nn_forward(x, params, seed, *, dropout_rate=DROPOUT_RATE,
                       training=True, num_samples=1, block_batch=512,
                       compute_dtype=jnp.bfloat16):
    """Fused HousingNN forward pass (optionally N MC-dropout samples) as one
    pallas_call. Returns (B, 1) if num_samples == 1, else (num_samples, B, 1)."""
    w1, b1, w2, b2, w3, b3 = params
    batch, nf = x.shape
    assert nf == NUM_FEATURES

    b_pad_min = _round_up(batch, LANE)
    tb = min(_round_up(block_batch, LANE), b_pad_min)
    if num_samples == 1 and b_pad_min > LANE:
        # Guarantee >=2 batch blocks so both v7x TensorCores get parallel work.
        tb = min(tb, _round_up((b_pad_min + 1) // 2, LANE))
    b_pad = _round_up(batch, tb)
    n_blocks = b_pad // tb

    xt = x.T.astype(compute_dtype)                   # (F, B), batch on lanes
    if b_pad != batch:
        xt = jnp.pad(xt, ((0, 0), (0, b_pad - batch)))

    apply_dropout = bool(training) and float(dropout_rate) > 0.0
    # Fold inverted-dropout keep_scale into the downstream weights (free,
    # one-time wrapper op on tiny matrices) so the kernel only masks.
    keep_scale = 1.0 / (1.0 - float(dropout_rate)) if apply_dropout else 1.0
    w2s = (w2 * keep_scale).astype(compute_dtype)
    w3s = (w3 * keep_scale).astype(compute_dtype)

    on_tpu = jax.default_backend() == "tpu"
    seed_arr = jnp.asarray([seed], dtype=jnp.int32)
    kernel = functools.partial(housing_nn_kernel,
                               dropout_rate=float(dropout_rate),
                               training=bool(training),
                               use_hw_prng=on_tpu,
                               block_batch=tb)

    def const_spec(shape):                           # VMEM-resident across grid
        return pl.BlockSpec(shape, lambda i, s: (0, 0))

    in_specs = [
        pl.BlockSpec(memory_space=pltpu.MemorySpace.SMEM),       # seed scalar
        pl.BlockSpec((NUM_FEATURES, tb), lambda i, s: (0, i)),   # x^T block
        const_spec((H1, NUM_FEATURES)), const_spec((H1, 1)),
        const_spec((H2, H1)), const_spec((H2, 1)),
        const_spec((OUT, H2)), const_spec((OUT, 1)),
    ]
    out_spec = pl.BlockSpec((1, OUT, tb), lambda i, s: (s, 0, i))

    kwargs = {}
    if on_tpu:
        kwargs["compiler_params"] = pltpu.CompilerParams(
            dimension_semantics=("parallel", "parallel"))

    # Grid = (batch_blocks, mc_samples): consecutive steps reuse the same x^T
    # block index, so Pallas skips the redundant x DMA across MC samples.
    out_t = pl.pallas_call(
        kernel,
        out_shape=jax.ShapeDtypeStruct((num_samples, OUT, b_pad), jnp.float32),
        grid=(n_blocks, num_samples),
        in_specs=in_specs,
        out_specs=out_spec,
        **kwargs,
    )(seed_arr, xt,
      w1.astype(compute_dtype), b1.astype(jnp.float32),
      w2s, b2.astype(jnp.float32),
      w3s, b3.astype(jnp.float32))

    out = out_t[:, 0, :batch][..., None]             # (S, B, 1)
    return out[0] if num_samples == 1 else out


def init_params(key):
    """nn.Linear-style init, weights in PyTorch (out_features, in_features) layout."""
    ks = jax.random.split(key, 6)

    def linear(kw, kb, fan_in, fan_out):
        bound = 1.0 / (fan_in ** 0.5)
        w = jax.random.uniform(kw, (fan_out, fan_in), jnp.float32, -bound, bound)
        b = jax.random.uniform(kb, (fan_out, 1), jnp.float32, -bound, bound)
        return w, b

    w1, b1 = linear(ks[0], ks[1], NUM_FEATURES, H1)
    w2, b2 = linear(ks[2], ks[3], H1, H2)
    w3, b3 = linear(ks[4], ks[5], H2, OUT)
    return (w1, b1, w2, b2, w3, b3)


def reference_forward(x, params, compute_dtype=jnp.bfloat16):
    """Pure-JAX eval-mode reference using the same bf16-matmul / f32-acc recipe."""
    w1, b1, w2, b2, w3, b3 = params
    xt = x.T.astype(compute_dtype)
    h1 = jnp.maximum(jnp.dot(w1.astype(compute_dtype), xt,
                             preferred_element_type=jnp.float32) + b1, 0.0)
    h2 = jnp.maximum(jnp.dot(w2.astype(compute_dtype), h1.astype(compute_dtype),
                             preferred_element_type=jnp.float32) + b2, 0.0)
    o = jnp.dot(w3.astype(compute_dtype), h2.astype(compute_dtype),
                preferred_element_type=jnp.float32) + b3
    return o.T                                        # (B, 1)


if __name__ == "__main__":
    key = jax.random.PRNGKey(0)
    k_param, k_x = jax.random.split(key)

    params = init_params(k_param)
    batch = 200   # non-multiple of 128 -> exercises padding and a 2-block grid
    x = jax.random.normal(k_x, (batch, NUM_FEATURES), dtype=jnp.float32)

    # Single forward pass with dropout active (MC-dropout training mode).
    out = jax.block_until_ready(
        housing_nn_forward(x, params, seed=42, training=True))
    assert out.shape == (batch, OUT)
    assert bool(jnp.all(jnp.isfinite(out)))

    # Several MC samples fused into one pallas_call (sample axis on the grid,
    # x^T block reused across samples).
    out_mc = jax.block_until_ready(
        housing_nn_forward(x, params, seed=7, training=True, num_samples=4))
    assert out_mc.shape == (4, batch, OUT)
    assert float(jnp.max(jnp.abs(out_mc[0] - out_mc[1]))) > 0.0  # distinct masks

    # Eval mode (dropout = identity) against the pure-JAX reference.
    out_eval = jax.block_until_ready(
        housing_nn_forward(x, params, seed=0, training=False))
    ref = reference_forward(x, params)
    assert jnp.allclose(out_eval, ref, atol=1e-3, rtol=1e-3), (
        float(jnp.max(jnp.abs(out_eval - ref))))

    print("KERNEL_OK")
</pallas_src>

<mosaic_0001>
module attributes {stable_mosaic.version = 11 : i64} {
  func.func @housing_nn_kernel(%arg0: i32, %arg1: i32, %arg2: memref<1xi32, #tpu.memory_space<smem>>, %arg3: memref<8x128xbf16, #tpu.memory_space<vmem>>, %arg4: memref<64x8xbf16, #tpu.memory_space<vmem>>, %arg5: memref<64x1xf32, #tpu.memory_space<vmem>>, %arg6: memref<32x64xbf16, #tpu.memory_space<vmem>>, %arg7: memref<32x1xf32, #tpu.memory_space<vmem>>, %arg8: memref<1x32xbf16, #tpu.memory_space<vmem>>, %arg9: memref<1x1xf32, #tpu.memory_space<vmem>>, %arg10: memref<1x1x128xf32, #tpu.memory_space<vmem>>) attributes {dimension_semantics = [#tpu.dimension_semantics<arbitrary>, #tpu.dimension_semantics<arbitrary>], iteration_bounds = array<i64: 2, 1>, scalar_prefetch = 0 : i64, scratch_operands = 0 : i64, tpu.core_type = #tpu.core_type<tc>, window_params = [{transform_indices = @transform_0, window_bounds = array<i64: 1>}, {transform_indices = @transform_1, window_bounds = array<i64: 8, 128>}, {pipeline_mode = #tpu.pipeline_mode<synchronous>, transform_indices = @transform_2, window_bounds = array<i64: 64, 8>}, {pipeline_mode = #tpu.pipeline_mode<synchronous>, transform_indices = @transform_3, window_bounds = array<i64: 64, 1>}, {pipeline_mode = #tpu.pipeline_mode<synchronous>, transform_indices = @transform_4, window_bounds = array<i64: 32, 64>}, {pipeline_mode = #tpu.pipeline_mode<synchronous>, transform_indices = @transform_5, window_bounds = array<i64: 32, 1>}, {pipeline_mode = #tpu.pipeline_mode<synchronous>, transform_indices = @transform_6, window_bounds = array<i64: 1, 32>}, {pipeline_mode = #tpu.pipeline_mode<synchronous>, transform_indices = @transform_7, window_bounds = array<i64: 1, 1>}, {transform_indices = @transform_8, window_bounds = array<i64: 1, 1, 128>}]} {
    %c0 = arith.constant 0 : index
    %c0_0 = arith.constant 0 : index
    %0 = vector.load %arg3[%c0, %c0_0] : memref<8x128xbf16, #tpu.memory_space<vmem>>, vector<8x128xbf16>
    %c0_1 = arith.constant 0 : index
    %1 = memref.load %arg2[%c0_1] : memref<1xi32, #tpu.memory_space<smem>>
    %c16777619_i32 = arith.constant 16777619 : i32
    %2 = arith.muli %arg1, %c16777619_i32 : i32
    %3 = arith.addi %1, %2 : i32
    %c128_i32 = arith.constant 128 : i32
    %4 = arith.muli %arg0, %c128_i32 : i32
    %c0_2 = arith.constant 0 : index
    %c0_3 = arith.constant 0 : index
    %5 = vector.load %arg4[%c0_2, %c0_3] : memref<64x8xbf16, #tpu.memory_space<vmem>>, vector<64x8xbf16>
    %cst = arith.constant dense<0.000000e+00> : vector<64x128xf32>
    %6 = tpu.matmul %5, %0, %cst {dimension_numbers = #tpu.dot_dimension_numbers<[1], [0], [0], [1], [0, 0, 1, 1], [], []>} : vector<64x8xbf16>, vector<8x128xbf16>, vector<64x128xf32> -> vector<64x128xf32>
    %c0_4 = arith.constant 0 : index
    %c0_5 = arith.constant 0 : index
    %7 = vector.load %arg5[%c0_4, %c0_5] : memref<64x1xf32, #tpu.memory_space<vmem>>, vector<64x1xf32>
    %8 = vector.broadcast %7 : vector<64x1xf32> to vector<64x128xf32>
    %9 = arith.addf %6, %8 : vector<64x128xf32>
    %cst_6 = arith.constant 0.000000e+00 : f32
    %10 = vector.broadcast %cst_6 : f32 to vector<64x128xf32>
    %11 = arith.maximumf %9, %10 : vector<64x128xf32>
    %12 = tpu.iota {dimensions = array<i32: 0>} : vector<64x128xi32>
    %13 = tpu.iota {dimensions = array<i32: 1>} : vector<64x128xi32>
    %14 = vector.broadcast %4 : i32 to vector<64x128xi32>
    %15 = arith.addi %13, %14 : vector<64x128xi32>
    %c-1640531535_i32 = arith.constant -1640531535 : i32
    %16 = vector.broadcast %c-1640531535_i32 : i32 to vector<64x128xi32>
    %17 = arith.muli %15, %16 : vector<64x128xi32>
    %c-2048144777_i32 = arith.constant -2048144777 : i32
    %18 = vector.broadcast %c-2048144777_i32 : i32 to vector<64x128xi32>
    %19 = arith.muli %12, %18 : vector<64x128xi32>
    %20 = arith.xori %17, %19 : vector<64x128xi32>
    %c668265263_i32 = arith.constant 668265263 : i32
    %21 = arith.muli %3, %c668265263_i32 : i32
    %22 = vector.broadcast %21 : i32 to vector<64x128xi32>
    %23 = arith.addi %20, %22 : vector<64x128xi32>
    %c1013904242_i32 = arith.constant 1013904242 : i32
    %24 = vector.broadcast %c1013904242_i32 : i32 to vector<64x128xi32>
    %25 = arith.addi %23, %24 : vector<64x128xi32>
    %c16_i32 = arith.constant 16 : i32
    %26 = vector.broadcast %c16_i32 : i32 to vector<64x128xi32>
    %27 = arith.shrui %25, %26 : vector<64x128xi32>
    %28 = arith.xori %25, %27 : vector<64x128xi32>
    %c-2048144789_i32 = arith.constant -2048144789 : i32
    %29 = vector.broadcast %c-2048144789_i32 : i32 to vector<64x128xi32>
    %30 = arith.muli %28, %29 : vector<64x128xi32>
    %c13_i32 = arith.constant 13 : i32
    %31 = vector.broadcast %c13_i32 : i32 to vector<64x128xi32>
    %32 = arith.shrui %30, %31 : vector<64x128xi32>
    %33 = arith.xori %30, %32 : vector<64x128xi32>
    %c-1028477387_i32 = arith.constant -1028477387 : i32
    %34 = vector.broadcast %c-1028477387_i32 : i32 to vector<64x128xi32>
    %35 = arith.muli %33, %34 : vector<64x128xi32>
    %c16_i32_7 = arith.constant 16 : i32
    %36 = vector.broadcast %c16_i32_7 : i32 to vector<64x128xi32>
    %37 = arith.shrui %35, %36 : vector<64x128xi32>
    %38 = arith.xori %35, %37 : vector<64x128xi32>
    %c429496729_i32 = arith.constant 429496729 : i32
    %39 = vector.broadcast %c429496729_i32 : i32 to vector<64x128xi32>
    %40 = arith.cmpi uge, %38, %39 : vector<64x128xi32>
    %cst_8 = arith.constant 0.000000e+00 : f32
    %41 = vector.broadcast %cst_8 : f32 to vector<64x128xf32>
    %42 = arith.select %40, %11, %41 : vector<64x128xi1>, vector<64x128xf32>
    %c0_9 = arith.constant 0 : index
    %c0_10 = arith.constant 0 : index
    %43 = vector.load %arg6[%c0_9, %c0_10] : memref<32x64xbf16, #tpu.memory_space<vmem>>, vector<32x64xbf16>
    %44 = arith.truncf %42 : vector<64x128xf32> to vector<64x128xbf16>
    %cst_11 = arith.constant dense<0.000000e+00> : vector<32x128xf32>
    %45 = tpu.matmul %43, %44, %cst_11 {dimension_numbers = #tpu.dot_dimension_numbers<[1], [0], [0], [1], [0, 0, 1, 1], [], []>} : vector<32x64xbf16>, vector<64x128xbf16>, vector<32x128xf32> -> vector<32x128xf32>
    %c0_12 = arith.constant 0 : index
    %c0_13 = arith.constant 0 : index
    %46 = vector.load %arg7[%c0_12, %c0_13] : memref<32x1xf32, #tpu.memory_space<vmem>>, vector<32x1xf32>
    %47 = vector.broadcast %46 : vector<32x1xf32> to vector<32x128xf32>
    %48 = arith.addf %45, %47 : vector<32x128xf32>
    %cst_14 = arith.constant 0.000000e+00 : f32
    %49 = vector.broadcast %cst_14 : f32 to vector<32x128xf32>
    %50 = arith.maximumf %48, %49 : vector<32x128xf32>
    %51 = tpu.iota {dimensions = array<i32: 0>} : vector<32x128xi32>
    %52 = tpu.iota {dimensions = array<i32: 1>} : vector<32x128xi32>
    %53 = vector.broadcast %4 : i32 to vector<32x128xi32>
    %54 = arith.addi %52, %53 : vector<32x128xi32>
    %c-1640531535_i32_15 = arith.constant -1640531535 : i32
    %55 = vector.broadcast %c-1640531535_i32_15 : i32 to vector<32x128xi32>
    %56 = arith.muli %54, %55 : vector<32x128xi32>
    %c-2048144777_i32_16 = arith.constant -2048144777 : i32
    %57 = vector.broadcast %c-2048144777_i32_16 : i32 to vector<32x128xi32>
    %58 = arith.muli %51, %57 : vector<32x128xi32>
    %59 = arith.xori %56, %58 : vector<32x128xi32>
    %c668265263_i32_17 = arith.constant 668265263 : i32
    %60 = arith.muli %3, %c668265263_i32_17 : i32
    %61 = vector.broadcast %60 : i32 to vector<32x128xi32>
    %62 = arith.addi %59, %61 : vector<32x128xi32>
    %c2009807682_i32 = arith.constant 2009807682 : i32
    %63 = vector.broadcast %c2009807682_i32 : i32 to vector<32x128xi32>
    %64 = arith.addi %62, %63 : vector<32x128xi32>
    %c16_i32_18 = arith.constant 16 : i32
    %65 = vector.broadcast %c16_i32_18 : i32 to vector<32x128xi32>
    %66 = arith.shrui %64, %65 : vector<32x128xi32>
    %67 = arith.xori %64, %66 : vector<32x128xi32>
    %c-2048144789_i32_19 = arith.constant -2048144789 : i32
    %68 = vector.broadcast %c-2048144789_i32_19 : i32 to vector<32x128xi32>
    %69 = arith.muli %67, %68 : vector<32x128xi32>
    %c13_i32_20 = arith.constant 13 : i32
    %70 = vector.broadcast %c13_i32_20 : i32 to vector<32x128xi32>
    %71 = arith.shrui %69, %70 : vector<32x128xi32>
    %72 = arith.xori %69, %71 : vector<32x128xi32>
    %c-1028477387_i32_21 = arith.constant -1028477387 : i32
    %73 = vector.broadcast %c-1028477387_i32_21 : i32 to vector<32x128xi32>
    %74 = arith.muli %72, %73 : vector<32x128xi32>
    %c16_i32_22 = arith.constant 16 : i32
    %75 = vector.broadcast %c16_i32_22 : i32 to vector<32x128xi32>
    %76 = arith.shrui %74, %75 : vector<32x128xi32>
    %77 = arith.xori %74, %76 : vector<32x128xi32>
    %c429496729_i32_23 = arith.constant 429496729 : i32
    %78 = vector.broadcast %c429496729_i32_23 : i32 to vector<32x128xi32>
    %79 = arith.cmpi uge, %77, %78 : vector<32x128xi32>
    %cst_24 = arith.constant 0.000000e+00 : f32
    %80 = vector.broadcast %cst_24 : f32 to vector<32x128xf32>
    %81 = arith.select %79, %50, %80 : vector<32x128xi1>, vector<32x128xf32>
    %c0_25 = arith.constant 0 : index
    %c0_26 = arith.constant 0 : index
    %82 = vector.load %arg8[%c0_25, %c0_26] : memref<1x32xbf16, #tpu.memory_space<vmem>>, vector<1x32xbf16>
    %83 = arith.truncf %81 : vector<32x128xf32> to vector<32x128xbf16>
    %cst_27 = arith.constant dense<0.000000e+00> : vector<1x128xf32>
    %84 = tpu.matmul %82, %83, %cst_27 {dimension_numbers = #tpu.dot_dimension_numbers<[1], [0], [0], [1], [0, 0, 1, 1], [], []>} : vector<1x32xbf16>, vector<32x128xbf16>, vector<1x128xf32> -> vector<1x128xf32>
    %c0_28 = arith.constant 0 : index
    %c0_29 = arith.constant 0 : index
    %85 = vector.load %arg9[%c0_28, %c0_29] : memref<1x1xf32, #tpu.memory_space<vmem>>, vector<1x1xf32>
    %86 = vector.broadcast %85 : vector<1x1xf32> to vector<1x128xf32>
    %87 = arith.addf %84, %86 : vector<1x128xf32>
    %88 = vector.shape_cast %87 : vector<1x128xf32> to vector<1x1x128xf32>
    %c0_30 = arith.constant 0 : index
    %c0_31 = arith.constant 0 : index
    %c0_32 = arith.constant 0 : index
    %89 = vector.load %arg10[%c0_30, %c0_31, %c0_32] : memref<1x1x128xf32, #tpu.memory_space<vmem>>, vector<1x1x128xf32>
    tpu.vector_store %arg10[%c0_30, %c0_31, %c0_32], %88 {strides = array<i32>} : memref<1x1x128xf32, #tpu.memory_space<vmem>>, vector<1x1x128xf32>,
    return
  }
  func.func @transform_0(%arg0: i32, %arg1: i32) -> i32 {
    %c0_i32 = arith.constant 0 : i32
    %c0_i32_0 = arith.constant 0 : i32
    return %c0_i32 : i32
  }
  func.func @transform_1(%arg0: i32, %arg1: i32) -> (i32, i32) {
    %c0_i32 = arith.constant 0 : i32
    %c0_i32_0 = arith.constant 0 : i32
    return %c0_i32, %arg0 : i32, i32
  }
  func.func @transform_2(%arg0: i32, %arg1: i32) -> (i32, i32) {
    %c0_i32 = arith.constant 0 : i32
    %c0_i32_0 = arith.constant 0 : i32
    %c0_i32_1 = arith.constant 0 : i32
    return %c0_i32, %c0_i32_0 : i32, i32
  }
  func.func @transform_3(%arg0: i32, %arg1: i32) -> (i32, i32) {
    %c0_i32 = arith.constant 0 : i32
    %c0_i32_0 = arith.constant 0 : i32
    %c0_i32_1 = arith.constant 0 : i32
    return %c0_i32, %c0_i32_0 : i32, i32
  }
  func.func @transform_4(%arg0: i32, %arg1: i32) -> (i32, i32) {
    %c0_i32 = arith.constant 0 : i32
    %c0_i32_0 = arith.constant 0 : i32
    %c0_i32_1 = arith.constant 0 : i32
    return %c0_i32, %c0_i32_0 : i32, i32
  }
  func.func @transform_5(%arg0: i32, %arg1: i32) -> (i32, i32) {
    %c0_i32 = arith.constant 0 : i32
    %c0_i32_0 = arith.constant 0 : i32
    %c0_i32_1 = arith.constant 0 : i32
    return %c0_i32, %c0_i32_0 : i32, i32
  }
  func.func @transform_6(%arg0: i32, %arg1: i32) -> (i32, i32) {
    %c0_i32 = arith.constant 0 : i32
    %c0_i32_0 = arith.constant 0 : i32
    %c0_i32_1 = arith.constant 0 : i32
    return %c0_i32, %c0_i32_0 : i32, i32
  }
  func.func @transform_7(%arg0: i32, %arg1: i32) -> (i32, i32) {
    %c0_i32 = arith.constant 0 : i32
    %c0_i32_0 = arith.constant 0 : i32
    %c0_i32_1 = arith.constant 0 : i32
    return %c0_i32, %c0_i32_0 : i32, i32
  }
  func.func @transform_8(%arg0: i32, %arg1: i32) -> (i32, i32, i32) {
    %c0_i32 = arith.constant 0 : i32
    %c0_i32_0 = arith.constant 0 : i32
    return %arg1, %c0_i32, %arg0 : i32, i32, i32
  }
}

</mosaic_0001>

<llo_original>
// kernel: tpu_custom_call.1
$region0: #{tpu_custom_call.1}
  #allocation0 [shape = 'u32[]', space=smem, size = 0x4, offset = 0x4, fixed_abs, tag = 'smem constant byte address 0x4 - core index']
  #allocation1 [shape = 'u32[72,128]{1,0:T(1,128)}', space=vmem, size = 0x9000, scoped, tag = 'internal scratch']
  #allocation2 [shape = 's32[1]{0:T(128)S(6)}', space=smem, size = 0x200, scoped, tag = 'scoped memory for tpu_custom_call.1']
  #allocation3 [shape = 'f32[1,1]{1,0:T(1,128)S(1)}', space=vmem, size = 0x200, scoped, tag = 'scoped memory for tpu_custom_call.1']
  %s0 = inlined_call_operand.<no memory space> [shape: s32[1], index: 0, kind: input, shape index: {}]
  %s1 = inlined_call_operand.vmem [shape: bf16[8,256], index: 1, kind: input, shape index: {}]
  %s2 = inlined_call_operand.vmem [shape: bf16[64,8], index: 2, kind: input, shape index: {}]
  %s3 = inlined_call_operand.vmem [shape: f32[64,1], index: 3, kind: input, shape index: {}]
  %s4 = inlined_call_operand.vmem [shape: bf16[32,64], index: 4, kind: input, shape index: {}]
  %s5 = inlined_call_operand.vmem [shape: f32[32,1], index: 5, kind: input, shape index: {}]
  %s6 = inlined_call_operand.vmem [shape: bf16[1,32], index: 6, kind: input, shape index: {}]
  %s7 = inlined_call_operand.<no memory space> [shape: f32[1,1], index: 7, kind: input, shape index: {}]
  %s8 = inlined_call_operand.hbm [shape: f32[1,1,256], index: 8, kind: output, shape index: {}]
  %s9 = sld [smem:[#allocation0]]
  $region65: #{tpu_custom_call.1} parent=0
    _
  %s11 = ssub.s32 1, %s9
  %s12 = scalar_select 0, %s11, %s9
  %13 = sst [smem:[#allocation2]] %s0
  %v14 = vstv %s7
  %15 = vst [vmem:[#allocation3] sm:$0x1] %v14
  $region1: #{tpu_custom_call.1} parent=0
    #allocation4 [shape = 'u8[1024]{0}', space=vmem, size = 0x400, scoped, tag = 'output window, operand 0']
    #allocation5 [shape = 's32[2]{0}', space=sflag, size = 0x8, scoped, tag = 'scoped memory for tpu_custom_call.1']
    %16 = vsyncpa [#allocation5], 0
    %s17 = scalar_lea.sflag [#allocation5], 1
    %18 = vsyncpa %s17, 0
    loop: start=0, step=1, limit=4
    $region2: #{tpu_custom_call.1} parent=1 // loop_pre_header
      _
    $region3: #{tpu_custom_call.1} parent=1 // loop_header
      %s20 = sphi 0, %s24
      %p21 = scmp.ge.s32.totalorder %s20, 4
      %s27 = sphi 0, %s39
      %s28 = sphi 0, %s35
      %s29 = sphi 0, %s27
      %s30 = sphi 0, %s28
      %s31 = sphi 0, %s29
      %s32 = sphi 0, %s30
      %s40 = sphi 0, %s40
      %s42 = sphi 0, %s40
      %s43 = sphi 0, %s42
      %s57 = sphi 0, %s43
      %s63 = sphi 0, %s65
      %s66 = sphi 0, %s63
      %s67 = sphi 0, %s66
      %s83 = sphi 0, %s67
      %s87 = sphi 0, %s87
      %s89 = sphi 0, %s87
      %s90 = sphi 0, %s89
      %s104 = sphi 0, %s90
      %s108 = sphi 0, %s108
      %s110 = sphi 0, %s108
      %s111 = sphi 0, %s110
      %s125 = sphi 0, %s111
      %s129 = sphi 0, %s129
      %s131 = sphi 0, %s129
      %s132 = sphi 0, %s131
      %s146 = sphi 0, %s132
      %s150 = sphi 0, %s150
      %s152 = sphi 0, %s150
      %s153 = sphi 0, %s152
      %s167 = sphi 0, %s153
      %s171 = sphi 0, %s171
      %s173 = sphi 0, %s171
      %s174 = sphi 0, %s173
      %s188 = sphi 0, %s174
      %s192 = sphi 0, %s192
      %s194 = sphi 0, %s192
      %s195 = sphi 0, %s194
      %s209 = sphi 0, %s195
      %s217 = sphi 0, %s219
      %s220 = sphi 0, %s217
      %s221 = sphi 0, %s220
      %s237 = sphi 0, %s221
    $region4: #{tpu_custom_call.1} parent=1 // loop_header_branch
      %23 = sbr.rel (%p21) target = $region8
    $region5: #{tpu_custom_call.1} parent=1 // loop_body
      %s25 = ssub.s32 %s20, 1
      %s26 = ssub.s32 %s20, 2
      %s33 = sadd.s32 1, %s28
      %p34 = scmp.ge.s32.totalorder %s33, 1
      %s35 = scalar_select %p34, 0, %s33
      %s36 = sadd.s32 1, %s27
      %s37 = scalar_select %p34, %s36, %s27
      %p38 = scmp.ge.s32.totalorder %s37, 2
      %s39 = scalar_select %p38, 0, %s37
      %s41 = sadd.s32 %s40, 1
      %p44 = scmp.eq.s32.totalorder %s20, 1
      %p45 = scmp.ne.s32.totalorder %s40, %s42
      %p46 = scmp.eq.s32.totalorder %s20, 0
      %p47 = por %p45, %p46
      %p48 = scmp.ne.s32.totalorder %s40, %s42
      %p49 = scmp.eq.s32.totalorder %s25, 1
      %p50 = por %p48, %p49
      %p51 = scmp.ne.s32.totalorder %s42, %s43
      %p52 = scmp.eq.s32.totalorder %s25, 0
      %p53 = por %p51, %p52
      %p54 = scmp.ne.s32.totalorder %s42, %s43
      %p55 = scmp.eq.s32.totalorder %s26, 1
      %p56 = por %p54, %p55
      %p58 = scmp.ne.s32.totalorder %s43, %s57
      %p59 = scmp.eq.s32.totalorder %s26, 0
      %p60 = por %p58, %p59
      %s61 = ssub.s32 %s27, %s39
      %p62 = scmp.eq.s32.totalorder %s61, 0
      %s64 = sadd.s32 %s63, 1
      %s65 = scalar_select %p62, %s63, %s64
      %p68 = pneg %p62
      %p69 = scmp.eq.s32.totalorder %s20, 1
      %p70 = por %p68, %p69
      %p71 = scmp.ne.s32.totalorder %s63, %s66
      %p72 = scmp.eq.s32.totalorder %s20, 0
      %p73 = por %p71, %p72
      %p74 = scmp.ne.s32.totalorder %s63, %s66
      %p75 = scmp.eq.s32.totalorder %s25, 1
      %p76 = por %p74, %p75
      %p77 = scmp.ne.s32.totalorder %s66, %s67
      %p78 = scmp.eq.s32.totalorder %s25, 0
      %p79 = por %p77, %p78
      %p80 = scmp.ne.s32.totalorder %s66, %s67
      %p81 = scmp.eq.s32.totalorder %s26, 1
      %p82 = por %p80, %p81
      %p84 = scmp.ne.s32.totalorder %s67, %s83
      %p85 = scmp.eq.s32.totalorder %s26, 0
      %p86 = por %p84, %p85
      %s88 = sadd.s32 %s87, 1
      %p91 = scmp.eq.s32.totalorder %s20, 1
      %p92 = scmp.ne.s32.totalorder %s87, %s89
      %p93 = scmp.eq.s32.totalorder %s20, 0
      %p94 = por %p92, %p93
      %p95 = scmp.ne.s32.totalorder %s87, %s89
      %p96 = scmp.eq.s32.totalorder %s25, 1
      %p97 = por %p95, %p96
      %p98 = scmp.ne.s32.totalorder %s89, %s90
      %p99 = scmp.eq.s32.totalorder %s25, 0
      %p100 = por %p98, %p99
      %p101 = scmp.ne.s32.totalorder %s89, %s90
      %p102 = scmp.eq.s32.totalorder %s26, 1
      %p103 = por %p101, %p102
      %p105 = scmp.ne.s32.totalorder %s90, %s104
      %p106 = scmp.eq.s32.totalorder %s26, 0
      %p107 = por %p105, %p106
      %s109 = sadd.s32 %s108, 1
      %p112 = scmp.eq.s32.totalorder %s20, 1
      %p113 = scmp.ne.s32.totalorder %s108, %s110
      %p114 = scmp.eq.s32.totalorder %s20, 0
      %p115 = por %p113, %p114
      %p116 = scmp.ne.s32.totalorder %s108, %s110
      %p117 = scmp.eq.s32.totalorder %s25, 1
      %p118 = por %p116, %p117
      %p119 = scmp.ne.s32.totalorder %s110, %s111
      %p120 = scmp.eq.s32.totalorder %s25, 0
      %p121 = por %p119, %p120
      %p122 = scmp.ne.s32.totalorder %s110, %s111
      %p123 = scmp.eq.s32.totalorder %s26, 1
      %p124 = por %p122, %p123
      %p126 = scmp.ne.s32.totalorder %s111, %s125
      %p127 = scmp.eq.s32.totalorder %s26, 0
      %p128 = por %p126, %p127
      %s130 = sadd.s32 %s129, 1
      %p133 = scmp.eq.s32.totalorder %s20, 1
      %p134 = scmp.ne.s32.totalorder %s129, %s131
      %p135 = scmp.eq.s32.totalorder %s20, 0
      %p136 = por %p134, %p135
      %p137 = scmp.ne.s32.totalorder %s129, %s131
      %p138 = scmp.eq.s32.totalorder %s25, 1
      %p139 = por %p137, %p138
      %p140 = scmp.ne.s32.totalorder %s131, %s132
      %p141 = scmp.eq.s32.totalorder %s25, 0
      %p142 = por %p140, %p141
      %p143 = scmp.ne.s32.totalorder %s131, %s132
      %p144 = scmp.eq.s32.totalorder %s26, 1
      %p145 = por %p143, %p144
      %p147 = scmp.ne.s32.totalorder %s132, %s146
      %p148 = scmp.eq.s32.totalorder %s26, 0
      %p149 = por %p147, %p148
      %s151 = sadd.s32 %s150, 1
      %p154 = scmp.eq.s32.totalorder %s20, 1
      %p155 = scmp.ne.s32.totalorder %s150, %s152
      %p156 = scmp.eq.s32.totalorder %s20, 0
      %p157 = por %p155, %p156
      %p158 = scmp.ne.s32.totalorder %s150, %s152
      %p159 = scmp.eq.s32.totalorder %s25, 1
      %p160 = por %p158, %p159
      %p161 = scmp.ne.s32.totalorder %s152, %s153
      %p162 = scmp.eq.s32.totalorder %s25, 0
      %p163 = por %p161, %p162
      %p164 = scmp.ne.s32.totalorder %s152, %s153
      %p165 = scmp.eq.s32.totalorder %s26, 1
      %p166 = por %p164, %p165
      %p168 = scmp.ne.s32.totalorder %s153, %s167
      %p169 = scmp.eq.s32.totalorder %s26, 0
      %p170 = por %p168, %p169
      %s172 = sadd.s32 %s171, 1
      %p175 = scmp.eq.s32.totalorder %s20, 1
      %p176 = scmp.ne.s32.totalorder %s171, %s173
      %p177 = scmp.eq.s32.totalorder %s20, 0
      %p178 = por %p176, %p177
      %p179 = scmp.ne.s32.totalorder %s171, %s173
      %p180 = scmp.eq.s32.totalorder %s25, 1
      %p181 = por %p179, %p180
      %p182 = scmp.ne.s32.totalorder %s173, %s174
      %p183 = scmp.eq.s32.totalorder %s25, 0
      %p184 = por %p182, %p183
      %p185 = scmp.ne.s32.totalorder %s173, %s174
      %p186 = scmp.eq.s32.totalorder %s26, 1
      %p187 = por %p185, %p186
      %p189 = scmp.ne.s32.totalorder %s174, %s188
      %p190 = scmp.eq.s32.totalorder %s26, 0
      %p191 = por %p189, %p190
      %s193 = sadd.s32 %s192, 1
      %p196 = scmp.eq.s32.totalorder %s20, 1
      %p197 = scmp.ne.s32.totalorder %s192, %s194
      %p198 = scmp.eq.s32.totalorder %s20, 0
      %p199 = por %p197, %p198
      %p200 = scmp.ne.s32.totalorder %s192, %s194
      %p201 = scmp.eq.s32.totalorder %s25, 1
      %p202 = por %p200, %p201
      %p203 = scmp.ne.s32.totalorder %s194, %s195
      %p204 = scmp.eq.s32.totalorder %s25, 0
      %p205 = por %p203, %p204
      %p206 = scmp.ne.s32.totalorder %s194, %s195
      %p207 = scmp.eq.s32.totalorder %s26, 1
      %p208 = por %p206, %p207
      %p210 = scmp.ne.s32.totalorder %s195, %s209
      %p211 = scmp.eq.s32.totalorder %s26, 0
      %p212 = por %p210, %p211
      %s213 = ssub.s32 %s28, %s35
      %s214 = ssub.s32 %s27, %s39
      %s215 = sor.u32 %s213, %s214
      %p216 = scmp.eq.s32.totalorder %s215, 0
      %s218 = sadd.s32 %s217, 1
      %s219 = scalar_select %p216, %s217, %s218
      %p222 = pneg %p216
      %p223 = scmp.eq.s32.totalorder %s20, 1
      %p224 = por %p222, %p223
      %p225 = scmp.ne.s32.totalorder %s217, %s220
      %p226 = scmp.eq.s32.totalorder %s20, 0
      %p227 = por %p225, %p226
      %p228 = scmp.ne.s32.totalorder %s217, %s220
      %p229 = scmp.eq.s32.totalorder %s25, 1
      %p230 = por %p228, %p229
      %p231 = scmp.ne.s32.totalorder %s220, %s221
      %p232 = scmp.eq.s32.totalorder %s25, 0
      %p233 = por %p231, %p232
      %p234 = scmp.ne.s32.totalorder %s220, %s221
      %p235 = scmp.eq.s32.totalorder %s26, 1
      %p236 = por %p234, %p235
      %p238 = scmp.ne.s32.totalorder %s221, %s237
      %p239 = scmp.eq.s32.totalorder %s26, 0
      %p240 = por %p238, %p239
      %p241 = scmp.le.s32.totalorder 1, %s20
      %p242 = scmp.lt.s32.totalorder %s20, 3
      %p243 = pnand %p241, %p242
      %p244 = pneg %p243
      // Predicated region
      $region9: #{tpu_custom_call.1} parent=5 // pred_check
        _
      $region10: #{tpu_custom_call.1} parent=5 // pred_check_branch
        %246 = sbr.rel (%p243) target = $region12
      $region11: #{tpu_custom_call.1} parent=5 // pred_region
        %s247 = ssub.s32 %s20, 1
        // Predicated region
        $region13: #{tpu_custom_call.1} parent=11 // pred_check
          %p248 = pneg %p53
        $region14: #{tpu_custom_call.1} parent=11 // pred_check_branch
          %250 = sbr.rel (%p248) target = $region16
        $region15: #{tpu_custom_call.1} parent=11 // pred_region
          _
        $region16: #{tpu_custom_call.1} parent=11 // pred_fallthru
          _
        // Predicated region
        $region17: #{tpu_custom_call.1} parent=11 // pred_check
          %p251 = pneg %p100
        $region18: #{tpu_custom_call.1} parent=11 // pred_check_branch
          %253 = sbr.rel (%p251) target = $region20
        $region19: #{tpu_custom_call.1} parent=11 // pred_region
          _
        $region20: #{tpu_custom_call.1} parent=11 // pred_fallthru
          _
        // Predicated region
        $region21: #{tpu_custom_call.1} parent=11 // pred_check
          %p254 = pneg %p121
        $region22: #{tpu_custom_call.1} parent=11 // pred_check_branch
          %256 = sbr.rel (%p254) target = $region24
        $region23: #{tpu_custom_call.1} parent=11 // pred_region
          _
        $region24: #{tpu_custom_call.1} parent=11 // pred_fallthru
          _
        // Predicated region
        $region25: #{tpu_custom_call.1} parent=11 // pred_check
          %p257 = pneg %p142
        $region26: #{tpu_custom_call.1} parent=11 // pred_check_branch
          %259 = sbr.rel (%p257) target = $region28
        $region27: #{tpu_custom_call.1} parent=11 // pred_region
          _
        $region28: #{tpu_custom_call.1} parent=11 // pred_fallthru
          _
        // Predicated region
        $region29: #{tpu_custom_call.1} parent=11 // pred_check
          %p260 = pneg %p163
        $region30: #{tpu_custom_call.1} parent=11 // pred_check_branch
          %262 = sbr.rel (%p260) target = $region32
        $region31: #{tpu_custom_call.1} parent=11 // pred_region
          _
        $region32: #{tpu_custom_call.1} parent=11 // pred_fallthru
          _
        // Predicated region
        $region33: #{tpu_custom_call.1} parent=11 // pred_check
          %p263 = pneg %p184
        $region34: #{tpu_custom_call.1} parent=11 // pred_check_branch
          %265 = sbr.rel (%p263) target = $region36
        $region35: #{tpu_custom_call.1} parent=11 // pred_region
          _
        $region36: #{tpu_custom_call.1} parent=11 // pred_fallthru
          _
        // Predicated region
        $region37: #{tpu_custom_call.1} parent=11 // pred_check
          %p266 = pneg %p205
        $region38: #{tpu_custom_call.1} parent=11 // pred_check_branch
          %268 = sbr.rel (%p266) target = $region40
        $region39: #{tpu_custom_call.1} parent=11 // pred_region
          _
        $region40: #{tpu_custom_call.1} parent=11 // pred_fallthru
          _
      $region12: #{tpu_custom_call.1} parent=5 // pred_fallthru
        _
      %p269 = scmp.lt.s32.totalorder %s20, 2
      // Predicated region
      $region41: #{tpu_custom_call.1} parent=5 // pred_check
        %p270 = pneg %p269
      $region42: #{tpu_custom_call.1} parent=5 // pred_check_branch
        %272 = sbr.rel (%p270) target = $region44
      $region43: #{tpu_custom_call.1} parent=5 // pred_region
        // Predicated region
        $region45: #{tpu_custom_call.1} parent=43 // pred_check
          %p273 = pneg %p73
        $region46: #{tpu_custom_call.1} parent=43 // pred_check_branch
          %275 = sbr.rel (%p273) target = $region48
        $region47: #{tpu_custom_call.1} parent=43 // pred_region
          %p276 = scmp.lt.s32.totalorder %s27, 1
          %s277 = scalar_select %p276, %s27, 1
          %s278 = smul.addr %s277, 4
          %s279 = scalar_lea.vmem %s1, %s278
        $region48: #{tpu_custom_call.1} parent=43 // pred_fallthru
          _
      $region44: #{tpu_custom_call.1} parent=5 // pred_fallthru
        _
      %p280 = scmp.le.s32.totalorder 1, %s20
      %p281 = scmp.lt.s32.totalorder %s20, 3
      %p282 = pnand %p280, %p281
      %p283 = pneg %p282
      // Predicated region
      $region49: #{tpu_custom_call.1} parent=5 // pred_check
        _
      $region50: #{tpu_custom_call.1} parent=5 // pred_check_branch
        %285 = sbr.rel (%p282) target = $region52
      $region51: #{tpu_custom_call.1} parent=5 // pred_region
        %s286 = ssub.s32 %s20, 1
        %p287 = pneg %p53
        %p288 = pneg %p50
        %p289 = scmp.lt.s32.totalorder %s29, 1
        %s290 = scalar_select %p289, %s29, 1
        %s291 = smul.addr %s290, 4
        %s292 = scalar_lea.vmem %s1, %s291
        %p293 = pneg %p79
        %p294 = pneg %p76
        %p295 = pneg %p100
        %p296 = pneg %p97
        %p297 = pneg %p121
        %p298 = pneg %p118
        %p299 = pneg %p142
        %p300 = pneg %p139
        %p301 = pneg %p163
        %p302 = pneg %p160
        %p303 = pneg %p184
        %p304 = pneg %p181
        %p305 = pneg %p205
        %p306 = pneg %p202
        %p307 = pneg %p233
        %p308 = pneg %p230
        %s309 = sand.u32 %s220, 1
        %s310 = scalar_lea.sflag [#allocation5], %s309
        %s311 = sand.u32 %s220, 1
        %s312 = scalar_lea.vmem [#allocation4], %s311
        %p313 = scmp.lt.s32.totalorder %s29, 1
        %s314 = scalar_select %p313, %s29, 1
        %s315 = smul.addr %s314, 4
        %s316 = scalar_lea.vmem %s1, %s315
        %v318 = vld [vmem:[%s316] sm:$0xf]
        %s319 = sld [smem:[#allocation2]]
        %s320 = smul.u32 %s30, 16777619
        %s321 = sadd.s32 %s319, %s320
        %s322 = smul.u32 %s29, 128
        %v323 = vld [vmem:[%s2] sm:$0xf]
        %v324 = vld [vmem:[%s2 + $0x4] sm:$0xf]
        %v325 = vld [vmem:[%s2 + $0x8] sm:$0xf]
        %v326 = vld [vmem:[%s2 + $0xc] sm:$0xf]
        %v327 = vld [vmem:[%s2 + $0x10] sm:$0xf]
        %v328 = vld [vmem:[%s2 + $0x14] sm:$0xf]
        %v329 = vld [vmem:[%s2 + $0x18] sm:$0xf]
        %v330 = vld [vmem:[%s2 + $0x1c] sm:$0xf]
        %v331 = vld [vmem:[%s3] sm:$0xff]
        %v332 = vld [vmem:[%s3 + $0x8] sm:$0xff]
        %v333 = vld [vmem:[%s3 + $0x10] sm:$0xff]
        %v334 = vld [vmem:[%s3 + $0x18] sm:$0xff]
        %v335 = vld [vmem:[%s3 + $0x20] sm:$0xff]
        %v336 = vld [vmem:[%s3 + $0x28] sm:$0xff]
        %v337 = vld [vmem:[%s3 + $0x30] sm:$0xff]
        %v338 = vld [vmem:[%s3 + $0x38] sm:$0xff]
        %340 = vset.pattern.permute.xlu0 0
        %341 = vperm.xlu0 %340, %v331
        %v342 = vpop.permute.xlu0 %341
        %345 = vset.pattern.permute.xlu0 0
        %346 = vperm.xlu0 %345, %v332
        %v347 = vpop.permute.xlu0 %346
        %350 = vset.pattern.permute.xlu0 0
        %351 = vperm.xlu0 %350, %v333
        %v352 = vpop.permute.xlu0 %351
        %355 = vset.pattern.permute.xlu0 0
        %356 = vperm.xlu0 %355, %v334
        %v357 = vpop.permute.xlu0 %356
        %360 = vset.pattern.permute.xlu0 0
        %361 = vperm.xlu0 %360, %v335
        %v362 = vpop.permute.xlu0 %361
        %365 = vset.pattern.permute.xlu0 0
        %366 = vperm.xlu0 %365, %v336
        %v367 = vpop.permute.xlu0 %366
        %370 = vset.pattern.permute.xlu0 0
        %371 = vperm.xlu0 %370, %v337
        %v372 = vpop.permute.xlu0 %371
        %375 = vset.pattern.permute.xlu0 0
        %376 = vperm.xlu0 %375, %v338
        %v377 = vpop.permute.xlu0 %376
        %v387 = vunpack.c.l.b16 %v323
        %v388 = vunpack.c.l.b16 %v324
        %v389 = vunpack.c.l.b16 %v325
        %v390 = vunpack.c.l.b16 %v326
        %v391 = vunpack.c.l.b16 %v327
        %v392 = vunpack.c.l.b16 %v328
        %v393 = vunpack.c.l.b16 %v329
        %v394 = vunpack.c.l.b16 %v330
        %v395 = vpack.c.b16 %v388, %v387
        %v396 = vpack.c.b16 %v390, %v389
        %v397 = vpack.c.b16 %v392, %v391
        %v398 = vpack.c.b16 %v394, %v393
        %vm399 = vcmask 64512
        %v401 = vsel %vm399, %v395, 0
        %v404 = vsel %vm399, %v396, 0
        %v407 = vsel %vm399, %v397, 0
        %v410 = vsel %vm399, %v398, 0
        %vm412 = vcmask 1043456
        %v414 = vsel %vm412, %v318, 0
        %416 = vmatpush.bf16.msra.mxu0 0
        %417 = vmatpush.bf16.msra.mxu0 0
        %418 = vmatpush.bf16.msra.mxu0 0
        %419 = vmatpush.bf16.msra.mxu0 0
        %420 = vmatpush.bf16.msra.mxu0 0
        %421 = vmatpush.bf16.msra.mxu0 0
        %422 = vmatpush.bf16.msra.mxu0 0
        %423 = vmatpush.bf16.msra.mxu0 %v414
        %424 = vmatmul.bf16.gmra.mxu0 %v401
        %v425 = vpop.f32.mrf.mxu0
        %v426 = vadd.f32 %v342, %v425
        %v427 = vpop.f32.mrf.mxu0
        %v428 = vadd.f32 %v347, %v427
        %429 = vmatmul.bf16.gmra.mxu0 %v404
        %v430 = vpop.f32.mrf.mxu0
        %v431 = vadd.f32 %v352, %v430
        %v432 = vpop.f32.mrf.mxu0
        %v433 = vadd.f32 %v357, %v432
        %434 = vmatmul.bf16.gmra.mxu0 %v407
        %v435 = vpop.f32.mrf.mxu0
        %v436 = vadd.f32 %v362, %v435
        %v437 = vpop.f32.mrf.mxu0
        %v438 = vadd.f32 %v367, %v437
        %439 = vmatmul.bf16.gmra.mxu0 %v410
        %v440 = vpop.f32.mrf.mxu0
        %v441 = vadd.f32 %v372, %v440
        %v442 = vpop.f32.mrf.mxu0
        %v443 = vadd.f32 %v377, %v442
        %444 = vdwg.mxu0
        %v445 = vmax.f32 %v426, 0.0
        %v446 = vmax.f32 %v428, 0.0
        %v447 = vmax.f32 %v431, 0.0
        %v448 = vmax.f32 %v433, 0.0
        %v449 = vmax.f32 %v436, 0.0
        %v450 = vmax.f32 %v438, 0.0
        %v451 = vmax.f32 %v441, 0.0
        %v452 = vmax.f32 %v443, 0.0
        %v453 = vlaneseq
        %v454 = vshrl.u32 %v453, 7
        %v455 = vadd.s32 %v454, 8
        %v456 = vadd.s32 %v454, 16
        %v457 = vadd.s32 %v454, 24
        %v458 = vadd.s32 %v454, 32
        %v459 = vadd.s32 %v454, 40
        %v460 = vadd.s32 %v454, 48
        %v461 = vadd.s32 %v454, 56
        %v462 = vlaneseq
        %v463 = vand.u32 %v462, 127
        %v464 = vstv %s322
        %v465 = vadd.s32 %v463, %v464
        %v466 = vmul.u32 %v465, 2654435761
        %v467 = vmul.u32 %v454, 2246822519
        %v468 = vmul.u32 %v455, 2246822519
        %v469 = vmul.u32 %v456, 2246822519
        %v470 = vmul.u32 %v457, 2246822519
        %v471 = vmul.u32 %v458, 2246822519
        %v472 = vmul.u32 %v459, 2246822519
        %v473 = vmul.u32 %v460, 2246822519
        %v474 = vmul.u32 %v461, 2246822519
        %v475 = vxor.u32 %v466, %v467
        %v476 = vxor.u32 %v466, %v468
        %v477 = vxor.u32 %v466, %v469
        %v478 = vxor.u32 %v466, %v470
        %v479 = vxor.u32 %v466, %v471
        %v480 = vxor.u32 %v466, %v472
        %v481 = vxor.u32 %v466, %v473
        %v482 = vxor.u32 %v466, %v474
        %s483 = smul.u32 %s321, 668265263
        %v484 = vstv %s483
        %v485 = vadd.s32 %v475, %v484
        %v486 = vadd.s32 %v476, %v484
        %v487 = vadd.s32 %v477, %v484
        %v488 = vadd.s32 %v478, %v484
        %v489 = vadd.s32 %v479, %v484
        %v490 = vadd.s32 %v480, %v484
        %v491 = vadd.s32 %v481, %v484
        %v492 = vadd.s32 %v482, %v484
        %v493 = vadd.s32 %v485, 1013904242
        %v494 = vadd.s32 %v486, 1013904242
        %v495 = vadd.s32 %v487, 1013904242
        %v496 = vadd.s32 %v488, 1013904242
        %v497 = vadd.s32 %v489, 1013904242
        %v498 = vadd.s32 %v490, 1013904242
        %v499 = vadd.s32 %v491, 1013904242
        %v500 = vadd.s32 %v492, 1013904242
        %v501 = vshrl.u32 %v493, 16
        %v502 = vshrl.u32 %v494, 16
        %v503 = vshrl.u32 %v495, 16
        %v504 = vshrl.u32 %v496, 16
        %v505 = vshrl.u32 %v497, 16
        %v506 = vshrl.u32 %v498, 16
        %v507 = vshrl.u32 %v499, 16
        %v508 = vshrl.u32 %v500, 16
        %v509 = vxor.u32 %v493, %v501
        %v510 = vxor.u32 %v494, %v502
        %v511 = vxor.u32 %v495, %v503
        %v512 = vxor.u32 %v496, %v504
        %v513 = vxor.u32 %v497, %v505
        %v514 = vxor.u32 %v498, %v506
        %v515 = vxor.u32 %v499, %v507
        %v516 = vxor.u32 %v500, %v508
        %v517 = vmul.u32 %v509, 2246822507
        %v518 = vmul.u32 %v510, 2246822507
        %v519 = vmul.u32 %v511, 2246822507
        %v520 = vmul.u32 %v512, 2246822507
        %v521 = vmul.u32 %v513, 2246822507
        %v522 = vmul.u32 %v514, 2246822507
        %v523 = vmul.u32 %v515, 2246822507
        %v524 = vmul.u32 %v516, 2246822507
        %v525 = vshrl.u32 %v517, 13
        %v526 = vshrl.u32 %v518, 13
        %v527 = vshrl.u32 %v519, 13
        %v528 = vshrl.u32 %v520, 13
        %v529 = vshrl.u32 %v521, 13
        %v530 = vshrl.u32 %v522, 13
        %v531 = vshrl.u32 %v523, 13
        %v532 = vshrl.u32 %v524, 13
        %v533 = vxor.u32 %v517, %v525
        %v534 = vxor.u32 %v518, %v526
        %v535 = vxor.u32 %v519, %v527
        %v536 = vxor.u32 %v520, %v528
        %v537 = vxor.u32 %v521, %v529
        %v538 = vxor.u32 %v522, %v530
        %v539 = vxor.u32 %v523, %v531
        %v540 = vxor.u32 %v524, %v532
        %v541 = vmul.u32 %v533, 3266489909
        %v542 = vmul.u32 %v534, 3266489909
        %v543 = vmul.u32 %v535, 3266489909
        %v544 = vmul.u32 %v536, 3266489909
        %v545 = vmul.u32 %v537, 3266489909
        %v546 = vmul.u32 %v538, 3266489909
        %v547 = vmul.u32 %v539, 3266489909
        %v548 = vmul.u32 %v540, 3266489909
        %v549 = vshrl.u32 %v541, 16
        %v550 = vshrl.u32 %v542, 16
        %v551 = vshrl.u32 %v543, 16
        %v552 = vshrl.u32 %v544, 16
        %v553 = vshrl.u32 %v545, 16
        %v554 = vshrl.u32 %v546, 16
        %v555 = vshrl.u32 %v547, 16
        %v556 = vshrl.u32 %v548, 16
        %v557 = vxor.u32 %v541, %v549
        %v558 = vxor.u32 %v542, %v550
        %v559 = vxor.u32 %v543, %v551
        %v560 = vxor.u32 %v544, %v552
        %v561 = vxor.u32 %v545, %v553
        %v562 = vxor.u32 %v546, %v554
        %v563 = vxor.u32 %v547, %v555
        %v564 = vxor.u32 %v548, %v556
        %v565 = vadd.s32 %v557, 2147483648
        %vm567 = vcmp.ge.s32.totalorder %v565, 2576980377
        %v568 = vadd.s32 %v558, 2147483648
        %vm570 = vcmp.ge.s32.totalorder %v568, 2576980377
        %v571 = vadd.s32 %v559, 2147483648
        %vm573 = vcmp.ge.s32.totalorder %v571, 2576980377
        %v574 = vadd.s32 %v560, 2147483648
        %vm576 = vcmp.ge.s32.totalorder %v574, 2576980377
        %v577 = vadd.s32 %v561, 2147483648
        %vm579 = vcmp.ge.s32.totalorder %v577, 2576980377
        %v580 = vadd.s32 %v562, 2147483648
        %vm582 = vcmp.ge.s32.totalorder %v580, 2576980377
        %v583 = vadd.s32 %v563, 2147483648
        %vm585 = vcmp.ge.s32.totalorder %v583, 2576980377
        %v586 = vadd.s32 %v564, 2147483648
        %vm588 = vcmp.ge.s32.totalorder %v586, 2576980377
        %v589 = vsel %vm567, %v445, 0.0
        %v590 = vsel %vm570, %v446, 0.0
        %v591 = vsel %vm573, %v447, 0.0
        %v592 = vsel %vm576, %v448, 0.0
        %v593 = vsel %vm579, %v449, 0.0
        %v594 = vsel %vm582, %v450, 0.0
        %v595 = vsel %vm585, %v451, 0.0
        %v596 = vsel %vm588, %v452, 0.0
        %v597 = vld [vmem:[%s4] sm:$0xf]
        %v598 = vld [vmem:[%s4 + $0x4] sm:$0xf]
        %v599 = vld [vmem:[%s4 + $0x8] sm:$0xf]
        %v600 = vld [vmem:[%s4 + $0xc] sm:$0xf]
        %v601 = vpack.c.bf16 %v590, %v589
        %v602 = vpack.c.bf16 %v592, %v591
        %v603 = vpack.c.bf16 %v594, %v593
        %v604 = vpack.c.bf16 %v596, %v595
        %v605 = vld [vmem:[%s5] sm:$0xff]
        %v606 = vld [vmem:[%s5 + $0x8] sm:$0xff]
        %v607 = vld [vmem:[%s5 + $0x10] sm:$0xff]
        %v608 = vld [vmem:[%s5 + $0x18] sm:$0xff]
        %610 = vset.pattern.permute.xlu0 0
        %611 = vperm.xlu0 %610, %v605
        %v612 = vpop.permute.xlu0 %611
        %615 = vset.pattern.permute.xlu0 0
        %616 = vperm.xlu0 %615, %v606
        %v617 = vpop.permute.xlu0 %616
        %620 = vset.pattern.permute.xlu0 0
        %621 = vperm.xlu0 %620, %v607
        %v622 = vpop.permute.xlu0 %621
        %625 = vset.pattern.permute.xlu0 0
        %626 = vperm.xlu0 %625, %v608
        %v627 = vpop.permute.xlu0 %626
        %v633 = vunpack.c.l.b16 %v597
        %v634 = vunpack.c.l.b16 %v598
        %v635 = vunpack.c.l.b16 %v599
        %v636 = vunpack.c.l.b16 %v600
        %v637 = vpack.c.b16 %v634, %v633
        %v638 = vpack.c.b16 %v636, %v635
        %vm639 = vcmask 523264
        %v641 = vsel %vm639, %v637, 0
        %v644 = vsel %vm639, %v638, 0
        %646 = vmatpush.bf16.msra.mxu0 0
        %647 = vmatpush.bf16.msra.mxu0 0
        %648 = vmatpush.bf16.msra.mxu0 0
        %649 = vmatpush.bf16.msra.mxu0 0
        %650 = vmatpush.bf16.msra.mxu0 %v604
        %651 = vmatpush.bf16.msra.mxu0 %v603
        %652 = vmatpush.bf16.msra.mxu0 %v602
        %653 = vmatpush.bf16.msra.mxu0 %v601
        %654 = vmatmul.bf16.gmra.mxu0 %v641
        %v655 = vpop.f32.mrf.mxu0
        %v656 = vadd.f32 %v612, %v655
        %v657 = vpop.f32.mrf.mxu0
        %v658 = vadd.f32 %v617, %v657
        %659 = vmatmul.bf16.gmra.mxu0 %v644
        %v660 = vpop.f32.mrf.mxu0
        %v661 = vadd.f32 %v622, %v660
        %v662 = vpop.f32.mrf.mxu0
        %v663 = vadd.f32 %v627, %v662
        %664 = vdwg.mxu0
        %v665 = vmax.f32 %v656, 0.0
        %v666 = vmax.f32 %v658, 0.0
        %v667 = vmax.f32 %v661, 0.0
        %v668 = vmax.f32 %v663, 0.0
        %v669 = vadd.s32 %v485, 2009807682
        %v670 = vadd.s32 %v486, 2009807682
        %v671 = vadd.s32 %v487, 2009807682
        %v672 = vadd.s32 %v488, 2009807682
        %v673 = vshrl.u32 %v669, 16
        %v674 = vshrl.u32 %v670, 16
        %v675 = vshrl.u32 %v671, 16
        %v676 = vshrl.u32 %v672, 16
        %v677 = vxor.u32 %v669, %v673
        %v678 = vxor.u32 %v670, %v674
        %v679 = vxor.u32 %v671, %v675
        %v680 = vxor.u32 %v672, %v676
        %v681 = vmul.u32 %v677, 2246822507
        %v682 = vmul.u32 %v678, 2246822507
        %v683 = vmul.u32 %v679, 2246822507
        %v684 = vmul.u32 %v680, 2246822507
        %v685 = vshrl.u32 %v681, 13
        %v686 = vshrl.u32 %v682, 13
        %v687 = vshrl.u32 %v683, 13
        %v688 = vshrl.u32 %v684, 13
        %v689 = vxor.u32 %v681, %v685
        %v690 = vxor.u32 %v682, %v686
        %v691 = vxor.u32 %v683, %v687
        %v692 = vxor.u32 %v684, %v688
        %v693 = vmul.u32 %v689, 3266489909
        %v694 = vmul.u32 %v690, 3266489909
        %v695 = vmul.u32 %v691, 3266489909
        %v696 = vmul.u32 %v692, 3266489909
        %v697 = vshrl.u32 %v693, 16
        %v698 = vshrl.u32 %v694, 16
        %v699 = vshrl.u32 %v695, 16
        %v700 = vshrl.u32 %v696, 16
        %v701 = vxor.u32 %v693, %v697
        %v702 = vxor.u32 %v694, %v698
        %v703 = vxor.u32 %v695, %v699
        %v704 = vxor.u32 %v696, %v700
        %v705 = vadd.s32 %v701, 2147483648
        %vm707 = vcmp.ge.s32.totalorder %v705, 2576980377
        %v708 = vadd.s32 %v702, 2147483648
        %vm710 = vcmp.ge.s32.totalorder %v708, 2576980377
        %v711 = vadd.s32 %v703, 2147483648
        %vm713 = vcmp.ge.s32.totalorder %v711, 2576980377
        %v714 = vadd.s32 %v704, 2147483648
        %vm716 = vcmp.ge.s32.totalorder %v714, 2576980377
        %v717 = vsel %vm707, %v665, 0.0
        %v718 = vsel %vm710, %v666, 0.0
        %v719 = vsel %vm713, %v667, 0.0
        %v720 = vsel %vm716, %v668, 0.0
        %v721 = vld [vmem:[%s6] sm:$0x1]
        %v722 = vpack.c.bf16 %v718, %v717
        %v723 = vpack.c.bf16 %v720, %v719
        %v724 = vld [vmem:[#allocation3] sm:$0x1]
        %726 = vset.pattern.permute.xlu0 0
        %727 = vperm.xlu0 %726, %v724
        %v728 = vpop.permute.xlu0 %727
        %v730 = vperm.slane %v728, 0
        %vm731 = vcmask 261120
        %v733 = vsel %vm731, %v721, 0
        %735 = vmatpush.bf16.msra.mxu0 0
        %736 = vmatpush.bf16.msra.mxu0 0
        %737 = vmatpush.bf16.msra.mxu0 0
        %738 = vmatpush.bf16.msra.mxu0 0
        %739 = vmatpush.bf16.msra.mxu0 0
        %740 = vmatpush.bf16.msra.mxu0 0
        %741 = vmatpush.bf16.msra.mxu0 %v723
        %742 = vmatpush.bf16.msra.mxu0 %v722
        %743 = vmatmul.bf16.gmra.mxu0 %v733
        %v744 = vpop.f32.mrf.mxu0
        %v745 = vadd.f32 %v730, %v744
        %v746 = vpop.f32.mrf.mxu0
        %747 = vdwg.mxu0
        %748 = vst [vmem:[%s312] sm:$0x1] %v745
        %s749 = sand.u32 %s220, 1
        %s750 = scalar_lea.sflag [#allocation5], %s749
        %s751 = sand.u32 %s220, 1
        %s752 = scalar_lea.vmem [#allocation4], %s751
        // Predicated region
        $region53: #{tpu_custom_call.1} parent=51 // pred_check
          %p753 = pneg %p230
        $region54: #{tpu_custom_call.1} parent=51 // pred_check_branch
          %755 = sbr.rel (%p753) target = $region56
        $region55: #{tpu_custom_call.1} parent=51 // pred_region
          %757 = vsyncadd %s750, 0
          %s758 = smul.addr %s30, 2
          %s759 = sadd.s32 %s29, %s758
          %s760 = scalar_lea.hbm %s8, %s759
          %s762 = sshll.u32 %s752, 4
          %s763 = int_to_ptr.vmem [resolvable:$true] %s762
          %s764 = sshll.u32 %s760, 4
          %s765 = int_to_ptr.hbm [resolvable:$true] %s764
          %767 = dma.vmem_to_hbm [thread:$0]  %s763, 16, %s765, %s750
        $region56: #{tpu_custom_call.1} parent=51 // pred_fallthru
          _
      $region52: #{tpu_custom_call.1} parent=5 // pred_fallthru
        _
      %p768 = scmp.le.s32.totalorder 2, %s20
      // Predicated region
      $region57: #{tpu_custom_call.1} parent=5 // pred_check
        %p769 = pneg %p768
      $region58: #{tpu_custom_call.1} parent=5 // pred_check_branch
        %771 = sbr.rel (%p769) target = $region60
      $region59: #{tpu_custom_call.1} parent=5 // pred_region
        %s772 = ssub.s32 %s20, 2
        // Predicated region
        $region61: #{tpu_custom_call.1} parent=59 // pred_check
          %p773 = pneg %p236
        $region62: #{tpu_custom_call.1} parent=59 // pred_check_branch
          %775 = sbr.rel (%p773) target = $region64
        $region63: #{tpu_custom_call.1} parent=59 // pred_region
          %s776 = sand.u32 %s221, 1
          %s777 = scalar_lea.sflag [#allocation5], %s776
          %s778 = sand.u32 %s221, 1
          %s779 = scalar_lea.vmem [#allocation4], %s778
          %781 = dma.done %s777, 16
        $region64: #{tpu_custom_call.1} parent=59 // pred_fallthru
          _
      $region60: #{tpu_custom_call.1} parent=5 // pred_fallthru
        _
    $region6: #{tpu_custom_call.1} parent=1 // loop_footer
      %s24 = sadd.s32 1, %s20
    $region7: #{tpu_custom_call.1} parent=1 // loop_footer_branch
      %19 = sbr.rel target = $region3
    $region8: #{tpu_custom_call.1} parent=1 // loop_exit
      _
    %782 = vsyncpa [#allocation5], 1
    %s783 = scalar_lea.sflag [#allocation5], 1
    %784 = vsyncpa %s783, 1

</llo_original>
